<compile_context>
chip_gen: v7x
topology: tpu7x:2x2x1
jax: 0.10.0
libtpu: 0.0.40
codegen_flags: <defaults>
</compile_context>

<pallas_src>
import functools

import jax
import jax.numpy as jnp
from jax import lax
from jax.experimental import pallas as pl
from jax.experimental.pallas import tpu as pltpu

_INT32_MIN = -(2 ** 31)
_SIGN_FIX = 0x7FFFFFFF  # XOR fix-up that makes negative f32 bit patterns ordered


def _topk_routing_kernel(q_ref, k_ref, rw_ref, idx_ref, *, scale, topk):
    bn, p2, _c = q_ref.shape
    nbits = max((p2 - 1).bit_length(), 1)
    idx_mask = (1 << nbits) - 1

    # Static per-batch loop: keeps the packed-logits working set at a single
    # batch so a large `bn` (grid-step amortization) never forces spills.
    for b in range(bn):
        q = q_ref[b]  # (p2, c)
        k = k_ref[b]  # (p2, c)

        # Transposed logits: logits_t[kq, qp] = <key[kq, :], query[qp, :]>.
        # Contraction on the last dims of both operands (attention-style
        # A @ B^T) feeds the MXU; the softmax temperature is applied later,
        # only to the selected top-k values.
        logits_t = jnp.einsum("kc,pc->kp", k, q,
                              preferred_element_type=jnp.float32)  # (p2, p2)

        # Monotone f32 -> int32 key, low `nbits` bits replaced by the reversed
        # key index so a single max yields both the value and the
        # smallest-index winner on ties (torch.topk tie behaviour).
        bits = pltpu.bitcast(logits_t, jnp.int32)
        okey = jnp.where(bits < 0, bits ^ _SIGN_FIX, bits)
        rev_idx = (p2 - 1) - lax.broadcasted_iota(jnp.int32, (p2, p2), 0)
        packed = (okey & ~idx_mask) | rev_idx

        # Iterative top-k along the key (sublane) axis: one reduce + one select
        # per slot.  Packed keys are unique within a column, so the equality
        # mask is one-hot.
        kms = []
        for _ in range(topk):
            km = jnp.max(packed, axis=0, keepdims=True)       # (1, p2)
            kms.append(km)
            packed = jnp.where(packed == km, _INT32_MIN, packed)

        idxs = []
        vals = []
        for km in kms:
            idxs.append((p2 - 1) - (km & idx_mask))           # (1, p2) int32
            vbits = km & ~idx_mask                            # drop index bits
            vbits = jnp.where(vbits < 0, vbits ^ _SIGN_FIX, vbits)
            vals.append(pltpu.bitcast(vbits, jnp.float32) * scale)

        # Softmax over the topk slots: vals[0] is the row max by construction,
        # so exp(vals[0] - max) == 1 and no max pass is needed.
        if topk > 1:
            exps = [jnp.exp(v - vals[0]) for v in vals[1:]]
            denom = exps[0]
            for e in exps[1:]:
                denom = denom + e
            denom = denom + 1.0
        else:
            exps = []
            denom = jnp.ones_like(vals[0])
        inv = pl.reciprocal(denom, approx=True)   # EUP seed
        inv = inv * (2.0 - denom * inv)           # one Newton step (near exact)
        weights = [inv] + [e * inv for e in exps]

        # Lane-dense, slot-major row: (1, topk*p2), stored into the 2-D block.
        rw_ref[b:b + 1, :] = jnp.concatenate(weights, axis=-1).astype(rw_ref.dtype)
        idx_ref[b:b + 1, :] = jnp.concatenate(idxs, axis=-1)


def _tensorcores_per_chip():
    """Best-effort sniff; only affects block-batch choice, never correctness."""
    try:
        kind = (jax.devices()[0].device_kind or "").lower()
    except Exception:
        return 1
    if "v5" in kind or "v6" in kind or "lite" in kind:
        return 1            # single-TC inference chips (v5e / v6e)
    if "7" in kind:
        return 2            # v7x: two TensorCores behind one device
    return 1


def _pick_block_batch(n, *, max_block=32, min_steps=None):
    """Largest batch block that (a) divides n, (b) keeps the 2-D output block
    sublane-legal (bn % 8 == 0 or bn == n), (c) leaves >= min_steps grid steps
    (>= 2 and even on 2-TC chips so both cores get work), (d) stays <=
    max_block to bound kernel unroll.  Per-step VMEM is tiny at these shapes,
    so the default scoped VMEM limit is never a constraint."""
    if min_steps is None:
        min_steps = 2 if _tensorcores_per_chip() >= 2 else 1
    cands = [b for b in range(1, n + 1)
             if n % b == 0 and (b % 8 == 0 or b == n)]

    def score(b):
        steps = n // b
        return (steps >= min_steps,                 # enough steps for all TCs
                b <= max_block,                     # bounded unroll / VMEM
                (steps % 2 == 0) or min_steps < 2,  # even split on 2-TC chips
                b)                                  # then: biggest block

    return max(cands, key=score)


def topk_routing(query, key, *, topk=4, qk_scale=None, block_batch=None):
    """query, key: (n, p2, c). Returns (r_weight, topk_index), each (n, p2, topk)."""
    n, p2, c = query.shape
    assert key.shape == (n, p2, c)
    assert 1 <= topk <= p2
    scale = float(qk_scale) if qk_scale is not None else float(c) ** (-0.5)
    # Scale is applied after top-k selection, which is only order-preserving
    # for a positive temperature (the default c**-0.5 always is).
    assert scale > 0.0

    bn = block_batch if block_batch is not None else _pick_block_batch(n)
    assert n % bn == 0 and (bn % 8 == 0 or bn == n)
    grid = (n // bn,)

    kernel = functools.partial(_topk_routing_kernel, scale=scale, topk=topk)

    grid_spec = pltpu.PrefetchScalarGridSpec(
        num_scalar_prefetch=0,
        grid=grid,
        in_specs=[
            pl.BlockSpec((bn, p2, c), lambda b: (b, 0, 0)),
            pl.BlockSpec((bn, p2, c), lambda b: (b, 0, 0)),
        ],
        out_specs=[
            pl.BlockSpec((bn, topk * p2), lambda b: (b, 0)),
            pl.BlockSpec((bn, topk * p2), lambda b: (b, 0)),
        ],
    )

    rw_flat, idx_flat = pl.pallas_call(
        kernel,
        out_shape=(
            jax.ShapeDtypeStruct((n, topk * p2), jnp.float32),
            jax.ShapeDtypeStruct((n, topk * p2), jnp.int32),
        ),
        grid_spec=grid_spec,
        compiler_params=pltpu.CompilerParams(
            dimension_semantics=("parallel",)),
    )(query, key)

    # Slot-major (n, topk*p2) -> (n, p2, topk): wrapper-side layout plumbing.
    r_weight = rw_flat.reshape(n, topk, p2).transpose(0, 2, 1)
    topk_index = idx_flat.reshape(n, topk, p2).transpose(0, 2, 1)
    return r_weight, topk_index


if __name__ == "__main__":
    # Small shapes consistent with the module: n=2 batches, p^2=64 regions,
    # qk_dim=32, topk=4.
    n, p2, c, topk = 2, 64, 32, 4

    key0 = jax.random.PRNGKey(0)
    kq, kk = jax.random.split(key0)
    query = jax.random.normal(kq, (n, p2, c), dtype=jnp.float32)
    key_t = jax.random.normal(kk, (n, p2, c), dtype=jnp.float32)

    r_weight, topk_index = topk_routing(query, key_t, topk=topk)
    jax.block_until_ready((r_weight, topk_index))

    # Pure-JAX reference of the PyTorch forward.
    scale = float(c) ** (-0.5)
    logits = jnp.einsum("npc,nqc->npq", query * scale, key_t)
    ref_vals, ref_idx = lax.top_k(logits, topk)
    ref_w = jax.nn.softmax(ref_vals, axis=-1)

    assert r_weight.shape == (n, p2, topk)
    assert topk_index.shape == (n, p2, topk)
    assert topk_index.dtype == jnp.int32
    # The packed-key top-k drops the low ceil(log2(p2)) mantissa bits of the
    # selected logits (<= 2^-18 relative error here), so allow a little slack.
    assert jnp.allclose(r_weight, ref_w, atol=1e-4, rtol=1e-4)
    # Index check robust to ties closer than the packed-key resolution: the
    # logits gathered at the kernel's indices must match the reference top-k
    # values (a genuinely wrong index would be off by far more than 1e-4).
    got_vals = jnp.take_along_axis(logits, topk_index, axis=-1)
    assert jnp.allclose(got_vals, ref_vals, atol=1e-4, rtol=1e-4)
    assert float(jnp.mean((topk_index == ref_idx).astype(jnp.float32))) > 0.99
    assert jnp.allclose(jnp.sum(r_weight, axis=-1), 1.0, atol=1e-5)

    print("KERNEL_OK")
</pallas_src>

<mosaic_0001>
module attributes {stable_mosaic.version = 11 : i64} {
  func.func @_topk_routing_kernel(%arg0: i32, %arg1: memref<2x64x32xf32, #tpu.memory_space<vmem>>, %arg2: memref<2x64x32xf32, #tpu.memory_space<vmem>>, %arg3: memref<2x256xf32, #tpu.memory_space<vmem>>, %arg4: memref<2x256xi32, #tpu.memory_space<vmem>>) attributes {dimension_semantics = [#tpu.dimension_semantics<parallel>], iteration_bounds = array<i64: 1>, scalar_prefetch = 0 : i64, scratch_operands = 0 : i64, tpu.core_type = #tpu.core_type<tc>, window_params = [{transform_indices = @transform_0, window_bounds = array<i64: 2, 64, 32>}, {transform_indices = @transform_1, window_bounds = array<i64: 2, 64, 32>}, {transform_indices = @transform_2, window_bounds = array<i64: 2, 256>}, {transform_indices = @transform_3, window_bounds = array<i64: 2, 256>}]} {
    %c0 = arith.constant 0 : index
    %c0_0 = arith.constant 0 : index
    %c0_1 = arith.constant 0 : index
    %0 = vector.load %arg1[%c0, %c0_0, %c0_1] : memref<2x64x32xf32, #tpu.memory_space<vmem>>, vector<1x64x32xf32>
    %1 = vector.shape_cast %0 : vector<1x64x32xf32> to vector<64x32xf32>
    %c0_2 = arith.constant 0 : index
    %c0_3 = arith.constant 0 : index
    %c0_4 = arith.constant 0 : index
    %2 = vector.load %arg2[%c0_2, %c0_3, %c0_4] : memref<2x64x32xf32, #tpu.memory_space<vmem>>, vector<1x64x32xf32>
    %3 = vector.shape_cast %2 : vector<1x64x32xf32> to vector<64x32xf32>
    "tpu.trace_start"() <{level = 10 : i32, message = "kc,pc->kp"}> : () -> ()
    %cst = arith.constant dense<0.000000e+00> : vector<64x64xf32>
    %4 = tpu.matmul %3, %1, %cst {dimension_numbers = #tpu.dot_dimension_numbers<[1], [1], [0], [0], [0, 0, 1, 0], [], []>} : vector<64x32xf32>, vector<64x32xf32>, vector<64x64xf32> -> vector<64x64xf32>
    "tpu.trace_stop"() : () -> ()
    %5 = tpu.bitcast %4 : vector<64x64xf32> -> vector<64x64xi32>
    %c0_i32 = arith.constant 0 : i32
    %6 = vector.broadcast %c0_i32 : i32 to vector<64x64xi32>
    %7 = arith.cmpi slt, %5, %6 : vector<64x64xi32>
    %c2147483647_i32 = arith.constant 2147483647 : i32
    %8 = vector.broadcast %c2147483647_i32 : i32 to vector<64x64xi32>
    %9 = arith.xori %5, %8 : vector<64x64xi32>
    %10 = arith.select %7, %9, %5 : vector<64x64xi1>, vector<64x64xi32>
    %11 = tpu.iota {dimensions = array<i32: 0>} : vector<64x64xi32>
    %c63_i32 = arith.constant 63 : i32
    %12 = vector.broadcast %c63_i32 : i32 to vector<64x64xi32>
    %13 = arith.subi %12, %11 : vector<64x64xi32>
    %c-64_i32 = arith.constant -64 : i32
    %14 = vector.broadcast %c-64_i32 : i32 to vector<64x64xi32>
    %15 = arith.andi %10, %14 : vector<64x64xi32>
    %16 = arith.ori %15, %13 : vector<64x64xi32>
    %cst_5 = arith.constant dense<-2147483648> : vector<64xi32>
    %17 = vector.multi_reduction <maxsi>, %16, %cst_5 [0] : vector<64x64xi32> to vector<64xi32>
    %18 = vector.shape_cast %17 : vector<64xi32> to vector<1x64xi32>
    %19 = vector.broadcast %18 : vector<1x64xi32> to vector<64x64xi32>
    %20 = arith.cmpi eq, %16, %19 : vector<64x64xi32>
    %c-2147483648_i32 = arith.constant -2147483648 : i32
    %21 = vector.broadcast %c-2147483648_i32 : i32 to vector<64x64xi32>
    %22 = arith.select %20, %21, %16 : vector<64x64xi1>, vector<64x64xi32>
    %cst_6 = arith.constant dense<-2147483648> : vector<64xi32>
    %23 = vector.multi_reduction <maxsi>, %22, %cst_6 [0] : vector<64x64xi32> to vector<64xi32>
    %24 = vector.shape_cast %23 : vector<64xi32> to vector<1x64xi32>
    %25 = vector.broadcast %24 : vector<1x64xi32> to vector<64x64xi32>
    %26 = arith.cmpi eq, %22, %25 : vector<64x64xi32>
    %c-2147483648_i32_7 = arith.constant -2147483648 : i32
    %27 = vector.broadcast %c-2147483648_i32_7 : i32 to vector<64x64xi32>
    %28 = arith.select %26, %27, %22 : vector<64x64xi1>, vector<64x64xi32>
    %cst_8 = arith.constant dense<-2147483648> : vector<64xi32>
    %29 = vector.multi_reduction <maxsi>, %28, %cst_8 [0] : vector<64x64xi32> to vector<64xi32>
    %30 = vector.shape_cast %29 : vector<64xi32> to vector<1x64xi32>
    %31 = vector.broadcast %30 : vector<1x64xi32> to vector<64x64xi32>
    %32 = arith.cmpi eq, %28, %31 : vector<64x64xi32>
    %c-2147483648_i32_9 = arith.constant -2147483648 : i32
    %33 = vector.broadcast %c-2147483648_i32_9 : i32 to vector<64x64xi32>
    %34 = arith.select %32, %33, %28 : vector<64x64xi1>, vector<64x64xi32>
    %cst_10 = arith.constant dense<-2147483648> : vector<64xi32>
    %35 = vector.multi_reduction <maxsi>, %34, %cst_10 [0] : vector<64x64xi32> to vector<64xi32>
    %36 = vector.shape_cast %35 : vector<64xi32> to vector<1x64xi32>
    %c63_i32_11 = arith.constant 63 : i32
    %37 = vector.broadcast %c63_i32_11 : i32 to vector<1x64xi32>
    %38 = arith.andi %18, %37 : vector<1x64xi32>
    %c63_i32_12 = arith.constant 63 : i32
    %39 = vector.broadcast %c63_i32_12 : i32 to vector<1x64xi32>
    %40 = arith.subi %39, %38 : vector<1x64xi32>
    %c-64_i32_13 = arith.constant -64 : i32
    %41 = vector.broadcast %c-64_i32_13 : i32 to vector<1x64xi32>
    %42 = arith.andi %18, %41 : vector<1x64xi32>
    %c0_i32_14 = arith.constant 0 : i32
    %43 = vector.broadcast %c0_i32_14 : i32 to vector<1x64xi32>
    %44 = arith.cmpi slt, %42, %43 : vector<1x64xi32>
    %c2147483647_i32_15 = arith.constant 2147483647 : i32
    %45 = vector.broadcast %c2147483647_i32_15 : i32 to vector<1x64xi32>
    %46 = arith.xori %42, %45 : vector<1x64xi32>
    %47 = arith.select %44, %46, %42 : vector<1x64xi1>, vector<1x64xi32>
    %48 = tpu.bitcast %47 : vector<1x64xi32> -> vector<1x64xf32>
    %cst_16 = arith.constant 0.176776692 : f32
    %49 = vector.broadcast %cst_16 : f32 to vector<1x64xf32>
    %50 = arith.mulf %48, %49 : vector<1x64xf32>
    %c63_i32_17 = arith.constant 63 : i32
    %51 = vector.broadcast %c63_i32_17 : i32 to vector<1x64xi32>
    %52 = arith.andi %24, %51 : vector<1x64xi32>
    %c63_i32_18 = arith.constant 63 : i32
    %53 = vector.broadcast %c63_i32_18 : i32 to vector<1x64xi32>
    %54 = arith.subi %53, %52 : vector<1x64xi32>
    %c-64_i32_19 = arith.constant -64 : i32
    %55 = vector.broadcast %c-64_i32_19 : i32 to vector<1x64xi32>
    %56 = arith.andi %24, %55 : vector<1x64xi32>
    %c0_i32_20 = arith.constant 0 : i32
    %57 = vector.broadcast %c0_i32_20 : i32 to vector<1x64xi32>
    %58 = arith.cmpi slt, %56, %57 : vector<1x64xi32>
    %c2147483647_i32_21 = arith.constant 2147483647 : i32
    %59 = vector.broadcast %c2147483647_i32_21 : i32 to vector<1x64xi32>
    %60 = arith.xori %56, %59 : vector<1x64xi32>
    %61 = arith.select %58, %60, %56 : vector<1x64xi1>, vector<1x64xi32>
    %62 = tpu.bitcast %61 : vector<1x64xi32> -> vector<1x64xf32>
    %cst_22 = arith.constant 0.176776692 : f32
    %63 = vector.broadcast %cst_22 : f32 to vector<1x64xf32>
    %64 = arith.mulf %62, %63 : vector<1x64xf32>
    %c63_i32_23 = arith.constant 63 : i32
    %65 = vector.broadcast %c63_i32_23 : i32 to vector<1x64xi32>
    %66 = arith.andi %30, %65 : vector<1x64xi32>
    %c63_i32_24 = arith.constant 63 : i32
    %67 = vector.broadcast %c63_i32_24 : i32 to vector<1x64xi32>
    %68 = arith.subi %67, %66 : vector<1x64xi32>
    %c-64_i32_25 = arith.constant -64 : i32
    %69 = vector.broadcast %c-64_i32_25 : i32 to vector<1x64xi32>
    %70 = arith.andi %30, %69 : vector<1x64xi32>
    %c0_i32_26 = arith.constant 0 : i32
    %71 = vector.broadcast %c0_i32_26 : i32 to vector<1x64xi32>
    %72 = arith.cmpi slt, %70, %71 : vector<1x64xi32>
    %c2147483647_i32_27 = arith.constant 2147483647 : i32
    %73 = vector.broadcast %c2147483647_i32_27 : i32 to vector<1x64xi32>
    %74 = arith.xori %70, %73 : vector<1x64xi32>
    %75 = arith.select %72, %74, %70 : vector<1x64xi1>, vector<1x64xi32>
    %76 = tpu.bitcast %75 : vector<1x64xi32> -> vector<1x64xf32>
    %cst_28 = arith.constant 0.176776692 : f32
    %77 = vector.broadcast %cst_28 : f32 to vector<1x64xf32>
    %78 = arith.mulf %76, %77 : vector<1x64xf32>
    %c63_i32_29 = arith.constant 63 : i32
    %79 = vector.broadcast %c63_i32_29 : i32 to vector<1x64xi32>
    %80 = arith.andi %36, %79 : vector<1x64xi32>
    %c63_i32_30 = arith.constant 63 : i32
    %81 = vector.broadcast %c63_i32_30 : i32 to vector<1x64xi32>
    %82 = arith.subi %81, %80 : vector<1x64xi32>
    %c-64_i32_31 = arith.constant -64 : i32
    %83 = vector.broadcast %c-64_i32_31 : i32 to vector<1x64xi32>
    %84 = arith.andi %36, %83 : vector<1x64xi32>
    %c0_i32_32 = arith.constant 0 : i32
    %85 = vector.broadcast %c0_i32_32 : i32 to vector<1x64xi32>
    %86 = arith.cmpi slt, %84, %85 : vector<1x64xi32>
    %c2147483647_i32_33 = arith.constant 2147483647 : i32
    %87 = vector.broadcast %c2147483647_i32_33 : i32 to vector<1x64xi32>
    %88 = arith.xori %84, %87 : vector<1x64xi32>
    %89 = arith.select %86, %88, %84 : vector<1x64xi1>, vector<1x64xi32>
    %90 = tpu.bitcast %89 : vector<1x64xi32> -> vector<1x64xf32>
    %cst_34 = arith.constant 0.176776692 : f32
    %91 = vector.broadcast %cst_34 : f32 to vector<1x64xf32>
    %92 = arith.mulf %90, %91 : vector<1x64xf32>
    %93 = arith.subf %64, %50 : vector<1x64xf32>
    %94 = math.exp %93 : vector<1x64xf32>
    %95 = arith.subf %78, %50 : vector<1x64xf32>
    %96 = math.exp %95 : vector<1x64xf32>
    %97 = arith.subf %92, %50 : vector<1x64xf32>
    %98 = math.exp %97 : vector<1x64xf32>
    %99 = arith.addf %94, %96 : vector<1x64xf32>
    %100 = arith.addf %99, %98 : vector<1x64xf32>
    %cst_35 = arith.constant 1.000000e+00 : f32
    %101 = vector.broadcast %cst_35 : f32 to vector<1x64xf32>
    %102 = arith.addf %100, %101 : vector<1x64xf32>
    %103 = tpu.reciprocal %102 {approx = true} : vector<1x64xf32> -> vector<1x64xf32>
    %104 = arith.mulf %102, %103 : vector<1x64xf32>
    %cst_36 = arith.constant 2.000000e+00 : f32
    %105 = vector.broadcast %cst_36 : f32 to vector<1x64xf32>
    %106 = arith.subf %105, %104 : vector<1x64xf32>
    %107 = arith.mulf %103, %106 : vector<1x64xf32>
    %108 = arith.mulf %94, %107 : vector<1x64xf32>
    %109 = arith.mulf %96, %107 : vector<1x64xf32>
    %110 = arith.mulf %98, %107 : vector<1x64xf32>
    %111 = tpu.concatenate %107, %108, %109, %110 in 1 : vector<1x64xf32>, vector<1x64xf32>, vector<1x64xf32>, vector<1x64xf32> -> vector<1x256xf32>
    %c0_37 = arith.constant 0 : index
    %c0_38 = arith.constant 0 : index
    %112 = vector.load %arg3[%c0_37, %c0_38] : memref<2x256xf32, #tpu.memory_space<vmem>>, vector<1x256xf32>
    tpu.vector_store %arg3[%c0_37, %c0_38], %111 {strides = array<i32>} : memref<2x256xf32, #tpu.memory_space<vmem>>, vector<1x256xf32>,
    %113 = tpu.concatenate %40, %54, %68, %82 in 1 : vector<1x64xi32>, vector<1x64xi32>, vector<1x64xi32>, vector<1x64xi32> -> vector<1x256xi32>
    %c0_39 = arith.constant 0 : index
    %c0_40 = arith.constant 0 : index
    %114 = vector.load %arg4[%c0_39, %c0_40] : memref<2x256xi32, #tpu.memory_space<vmem>>, vector<1x256xi32>
    tpu.vector_store %arg4[%c0_39, %c0_40], %113 {strides = array<i32>} : memref<2x256xi32, #tpu.memory_space<vmem>>, vector<1x256xi32>,
    %c1 = arith.constant 1 : index
    %c0_41 = arith.constant 0 : index
    %c0_42 = arith.constant 0 : index
    %115 = vector.load %arg1[%c1, %c0_41, %c0_42] : memref<2x64x32xf32, #tpu.memory_space<vmem>>, vector<1x64x32xf32>
    %116 = vector.shape_cast %115 : vector<1x64x32xf32> to vector<64x32xf32>
    %c1_43 = arith.constant 1 : index
    %c0_44 = arith.constant 0 : index
    %c0_45 = arith.constant 0 : index
    %117 = vector.load %arg2[%c1_43, %c0_44, %c0_45] : memref<2x64x32xf32, #tpu.memory_space<vmem>>, vector<1x64x32xf32>
    %118 = vector.shape_cast %117 : vector<1x64x32xf32> to vector<64x32xf32>
    "tpu.trace_start"() <{level = 10 : i32, message = "kc,pc->kp"}> : () -> ()
    %cst_46 = arith.constant dense<0.000000e+00> : vector<64x64xf32>
    %119 = tpu.matmul %118, %116, %cst_46 {dimension_numbers = #tpu.dot_dimension_numbers<[1], [1], [0], [0], [0, 0, 1, 0], [], []>} : vector<64x32xf32>, vector<64x32xf32>, vector<64x64xf32> -> vector<64x64xf32>
    "tpu.trace_stop"() : () -> ()
    %120 = tpu.bitcast %119 : vector<64x64xf32> -> vector<64x64xi32>
    %c0_i32_47 = arith.constant 0 : i32
    %121 = vector.broadcast %c0_i32_47 : i32 to vector<64x64xi32>
    %122 = arith.cmpi slt, %120, %121 : vector<64x64xi32>
    %c2147483647_i32_48 = arith.constant 2147483647 : i32
    %123 = vector.broadcast %c2147483647_i32_48 : i32 to vector<64x64xi32>
    %124 = arith.xori %120, %123 : vector<64x64xi32>
    %125 = arith.select %122, %124, %120 : vector<64x64xi1>, vector<64x64xi32>
    %126 = tpu.iota {dimensions = array<i32: 0>} : vector<64x64xi32>
    %c63_i32_49 = arith.constant 63 : i32
    %127 = vector.broadcast %c63_i32_49 : i32 to vector<64x64xi32>
    %128 = arith.subi %127, %126 : vector<64x64xi32>
    %c-64_i32_50 = arith.constant -64 : i32
    %129 = vector.broadcast %c-64_i32_50 : i32 to vector<64x64xi32>
    %130 = arith.andi %125, %129 : vector<64x64xi32>
    %131 = arith.ori %130, %128 : vector<64x64xi32>
    %cst_51 = arith.constant dense<-2147483648> : vector<64xi32>
    %132 = vector.multi_reduction <maxsi>, %131, %cst_51 [0] : vector<64x64xi32> to vector<64xi32>
    %133 = vector.shape_cast %132 : vector<64xi32> to vector<1x64xi32>
    %134 = vector.broadcast %133 : vector<1x64xi32> to vector<64x64xi32>
    %135 = arith.cmpi eq, %131, %134 : vector<64x64xi32>
    %c-2147483648_i32_52 = arith.constant -2147483648 : i32
    %136 = vector.broadcast %c-2147483648_i32_52 : i32 to vector<64x64xi32>
    %137 = arith.select %135, %136, %131 : vector<64x64xi1>, vector<64x64xi32>
    %cst_53 = arith.constant dense<-2147483648> : vector<64xi32>
    %138 = vector.multi_reduction <maxsi>, %137, %cst_53 [0] : vector<64x64xi32> to vector<64xi32>
    %139 = vector.shape_cast %138 : vector<64xi32> to vector<1x64xi32>
    %140 = vector.broadcast %139 : vector<1x64xi32> to vector<64x64xi32>
    %141 = arith.cmpi eq, %137, %140 : vector<64x64xi32>
    %c-2147483648_i32_54 = arith.constant -2147483648 : i32
    %142 = vector.broadcast %c-2147483648_i32_54 : i32 to vector<64x64xi32>
    %143 = arith.select %141, %142, %137 : vector<64x64xi1>, vector<64x64xi32>
    %cst_55 = arith.constant dense<-2147483648> : vector<64xi32>
    %144 = vector.multi_reduction <maxsi>, %143, %cst_55 [0] : vector<64x64xi32> to vector<64xi32>
    %145 = vector.shape_cast %144 : vector<64xi32> to vector<1x64xi32>
    %146 = vector.broadcast %145 : vector<1x64xi32> to vector<64x64xi32>
    %147 = arith.cmpi eq, %143, %146 : vector<64x64xi32>
    %c-2147483648_i32_56 = arith.constant -2147483648 : i32
    %148 = vector.broadcast %c-2147483648_i32_56 : i32 to vector<64x64xi32>
    %149 = arith.select %147, %148, %143 : vector<64x64xi1>, vector<64x64xi32>
    %cst_57 = arith.constant dense<-2147483648> : vector<64xi32>
    %150 = vector.multi_reduction <maxsi>, %149, %cst_57 [0] : vector<64x64xi32> to vector<64xi32>
    %151 = vector.shape_cast %150 : vector<64xi32> to vector<1x64xi32>
    %c63_i32_58 = arith.constant 63 : i32
    %152 = vector.broadcast %c63_i32_58 : i32 to vector<1x64xi32>
    %153 = arith.andi %133, %152 : vector<1x64xi32>
    %c63_i32_59 = arith.constant 63 : i32
    %154 = vector.broadcast %c63_i32_59 : i32 to vector<1x64xi32>
    %155 = arith.subi %154, %153 : vector<1x64xi32>
    %c-64_i32_60 = arith.constant -64 : i32
    %156 = vector.broadcast %c-64_i32_60 : i32 to vector<1x64xi32>
    %157 = arith.andi %133, %156 : vector<1x64xi32>
    %c0_i32_61 = arith.constant 0 : i32
    %158 = vector.broadcast %c0_i32_61 : i32 to vector<1x64xi32>
    %159 = arith.cmpi slt, %157, %158 : vector<1x64xi32>
    %c2147483647_i32_62 = arith.constant 2147483647 : i32
    %160 = vector.broadcast %c2147483647_i32_62 : i32 to vector<1x64xi32>
    %161 = arith.xori %157, %160 : vector<1x64xi32>
    %162 = arith.select %159, %161, %157 : vector<1x64xi1>, vector<1x64xi32>
    %163 = tpu.bitcast %162 : vector<1x64xi32> -> vector<1x64xf32>
    %cst_63 = arith.constant 0.176776692 : f32
    %164 = vector.broadcast %cst_63 : f32 to vector<1x64xf32>
    %165 = arith.mulf %163, %164 : vector<1x64xf32>
    %c63_i32_64 = arith.constant 63 : i32
    %166 = vector.broadcast %c63_i32_64 : i32 to vector<1x64xi32>
    %167 = arith.andi %139, %166 : vector<1x64xi32>
    %c63_i32_65 = arith.constant 63 : i32
    %168 = vector.broadcast %c63_i32_65 : i32 to vector<1x64xi32>
    %169 = arith.subi %168, %167 : vector<1x64xi32>
    %c-64_i32_66 = arith.constant -64 : i32
    %170 = vector.broadcast %c-64_i32_66 : i32 to vector<1x64xi32>
    %171 = arith.andi %139, %170 : vector<1x64xi32>
    %c0_i32_67 = arith.constant 0 : i32
    %172 = vector.broadcast %c0_i32_67 : i32 to vector<1x64xi32>
    %173 = arith.cmpi slt, %171, %172 : vector<1x64xi32>
    %c2147483647_i32_68 = arith.constant 2147483647 : i32
    %174 = vector.broadcast %c2147483647_i32_68 : i32 to vector<1x64xi32>
    %175 = arith.xori %171, %174 : vector<1x64xi32>
    %176 = arith.select %173, %175, %171 : vector<1x64xi1>, vector<1x64xi32>
    %177 = tpu.bitcast %176 : vector<1x64xi32> -> vector<1x64xf32>
    %cst_69 = arith.constant 0.176776692 : f32
    %178 = vector.broadcast %cst_69 : f32 to vector<1x64xf32>
    %179 = arith.mulf %177, %178 : vector<1x64xf32>
    %c63_i32_70 = arith.constant 63 : i32
    %180 = vector.broadcast %c63_i32_70 : i32 to vector<1x64xi32>
    %181 = arith.andi %145, %180 : vector<1x64xi32>
    %c63_i32_71 = arith.constant 63 : i32
    %182 = vector.broadcast %c63_i32_71 : i32 to vector<1x64xi32>
    %183 = arith.subi %182, %181 : vector<1x64xi32>
    %c-64_i32_72 = arith.constant -64 : i32
    %184 = vector.broadcast %c-64_i32_72 : i32 to vector<1x64xi32>
    %185 = arith.andi %145, %184 : vector<1x64xi32>
    %c0_i32_73 = arith.constant 0 : i32
    %186 = vector.broadcast %c0_i32_73 : i32 to vector<1x64xi32>
    %187 = arith.cmpi slt, %185, %186 : vector<1x64xi32>
    %c2147483647_i32_74 = arith.constant 2147483647 : i32
    %188 = vector.broadcast %c2147483647_i32_74 : i32 to vector<1x64xi32>
    %189 = arith.xori %185, %188 : vector<1x64xi32>
    %190 = arith.select %187, %189, %185 : vector<1x64xi1>, vector<1x64xi32>
    %191 = tpu.bitcast %190 : vector<1x64xi32> -> vector<1x64xf32>
    %cst_75 = arith.constant 0.176776692 : f32
    %192 = vector.broadcast %cst_75 : f32 to vector<1x64xf32>
    %193 = arith.mulf %191, %192 : vector<1x64xf32>
    %c63_i32_76 = arith.constant 63 : i32
    %194 = vector.broadcast %c63_i32_76 : i32 to vector<1x64xi32>
    %195 = arith.andi %151, %194 : vector<1x64xi32>
    %c63_i32_77 = arith.constant 63 : i32
    %196 = vector.broadcast %c63_i32_77 : i32 to vector<1x64xi32>
    %197 = arith.subi %196, %195 : vector<1x64xi32>
    %c-64_i32_78 = arith.constant -64 : i32
    %198 = vector.broadcast %c-64_i32_78 : i32 to vector<1x64xi32>
    %199 = arith.andi %151, %198 : vector<1x64xi32>
    %c0_i32_79 = arith.constant 0 : i32
    %200 = vector.broadcast %c0_i32_79 : i32 to vector<1x64xi32>
    %201 = arith.cmpi slt, %199, %200 : vector<1x64xi32>
    %c2147483647_i32_80 = arith.constant 2147483647 : i32
    %202 = vector.broadcast %c2147483647_i32_80 : i32 to vector<1x64xi32>
    %203 = arith.xori %199, %202 : vector<1x64xi32>
    %204 = arith.select %201, %203, %199 : vector<1x64xi1>, vector<1x64xi32>
    %205 = tpu.bitcast %204 : vector<1x64xi32> -> vector<1x64xf32>
    %cst_81 = arith.constant 0.176776692 : f32
    %206 = vector.broadcast %cst_81 : f32 to vector<1x64xf32>
    %207 = arith.mulf %205, %206 : vector<1x64xf32>
    %208 = arith.subf %179, %165 : vector<1x64xf32>
    %209 = math.exp %208 : vector<1x64xf32>
    %210 = arith.subf %193, %165 : vector<1x64xf32>
    %211 = math.exp %210 : vector<1x64xf32>
    %212 = arith.subf %207, %165 : vector<1x64xf32>
    %213 = math.exp %212 : vector<1x64xf32>
    %214 = arith.addf %209, %211 : vector<1x64xf32>
    %215 = arith.addf %214, %213 : vector<1x64xf32>
    %cst_82 = arith.constant 1.000000e+00 : f32
    %216 = vector.broadcast %cst_82 : f32 to vector<1x64xf32>
    %217 = arith.addf %215, %216 : vector<1x64xf32>
    %218 = tpu.reciprocal %217 {approx = true} : vector<1x64xf32> -> vector<1x64xf32>
    %219 = arith.mulf %217, %218 : vector<1x64xf32>
    %cst_83 = arith.constant 2.000000e+00 : f32
    %220 = vector.broadcast %cst_83 : f32 to vector<1x64xf32>
    %221 = arith.subf %220, %219 : vector<1x64xf32>
    %222 = arith.mulf %218, %221 : vector<1x64xf32>
    %223 = arith.mulf %209, %222 : vector<1x64xf32>
    %224 = arith.mulf %211, %222 : vector<1x64xf32>
    %225 = arith.mulf %213, %222 : vector<1x64xf32>
    %226 = tpu.concatenate %222, %223, %224, %225 in 1 : vector<1x64xf32>, vector<1x64xf32>, vector<1x64xf32>, vector<1x64xf32> -> vector<1x256xf32>
    %c1_84 = arith.constant 1 : index
    %c0_85 = arith.constant 0 : index
    %227 = vector.load %arg3[%c1_84, %c0_85] : memref<2x256xf32, #tpu.memory_space<vmem>>, vector<1x256xf32>
    tpu.vector_store %arg3[%c1_84, %c0_85], %226 {strides = array<i32>} : memref<2x256xf32, #tpu.memory_space<vmem>>, vector<1x256xf32>,
    %228 = tpu.concatenate %155, %169, %183, %197 in 1 : vector<1x64xi32>, vector<1x64xi32>, vector<1x64xi32>, vector<1x64xi32> -> vector<1x256xi32>
    %c1_86 = arith.constant 1 : index
    %c0_87 = arith.constant 0 : index
    %229 = vector.load %arg4[%c1_86, %c0_87] : memref<2x256xi32, #tpu.memory_space<vmem>>, vector<1x256xi32>
    tpu.vector_store %arg4[%c1_86, %c0_87], %228 {strides = array<i32>} : memref<2x256xi32, #tpu.memory_space<vmem>>, vector<1x256xi32>,
    return
  }
  func.func @transform_0(%arg0: i32) -> (i32, i32, i32) {
    %c0_i32 = arith.constant 0 : i32
    %c0_i32_0 = arith.constant 0 : i32
    %c0_i32_1 = arith.constant 0 : i32
    return %arg0, %c0_i32, %c0_i32_0 : i32, i32, i32
  }
  func.func @transform_1(%arg0: i32) -> (i32, i32, i32) {
    %c0_i32 = arith.constant 0 : i32
    %c0_i32_0 = arith.constant 0 : i32
    %c0_i32_1 = arith.constant 0 : i32
    return %arg0, %c0_i32, %c0_i32_0 : i32, i32, i32
  }
  func.func @transform_2(%arg0: i32) -> (i32, i32) {
    %c0_i32 = arith.constant 0 : i32
    %c0_i32_0 = arith.constant 0 : i32
    return %arg0, %c0_i32 : i32, i32
  }
  func.func @transform_3(%arg0: i32) -> (i32, i32) {
    %c0_i32 = arith.constant 0 : i32
    %c0_i32_0 = arith.constant 0 : i32
    return %arg0, %c0_i32 : i32, i32
  }
}

</mosaic_0001>

<llo_original>
// kernel: tpu_custom_call.1
$region0: #{tpu_custom_call.1}
  #allocation0 [shape = 'u32[]', space=smem, size = 0x4, offset = 0x4, fixed_abs, tag = 'smem constant byte address 0x4 - core index']
  #allocation1 [shape = 'u32[144,128]{1,0:T(1,128)}', space=vmem, size = 0x12000, scoped, tag = 'internal scratch']
  %s0 = inlined_call_operand.vmem [shape: f32[2,64,32], index: 0, kind: input, shape index: {}]
  %s1 = inlined_call_operand.vmem [shape: f32[2,64,32], index: 1, kind: input, shape index: {}]
  %s2 = inlined_call_operand.hbm [shape: f32[2,256], index: 2, kind: output, shape index: {0}]
  %s3 = inlined_call_operand.hbm [shape: s32[2,256], index: 3, kind: output, shape index: {1}]
  %4 = xla_tuple %s2, %s3
  %s5 = sld [smem:[#allocation0]]
  $region26: #{tpu_custom_call.1} parent=0
    _
  %s7 = ssub.s32 1, %s5
  %s8 = scalar_select 0, %s7, %s5
  $region1: #{tpu_custom_call.1} parent=0
    #allocation2 [shape = 'u8[2048]{0}', space=vmem, size = 0x800, scoped, tag = 'output window, operand 0, single buffered']
    #allocation3 [shape = 's32[1]{0}', space=sflag, size = 0x4, scoped, tag = 'scoped memory for tpu_custom_call.1']
    #allocation4 [shape = 'u8[2048]{0}', space=vmem, size = 0x800, scoped, tag = 'output window, operand 1, single buffered']
    #allocation5 [shape = 's32[1]{0}', space=sflag, size = 0x4, scoped, tag = 'scoped memory for tpu_custom_call.1']
    %9 = vsyncpa [#allocation3], 0
    %10 = vsyncpa [#allocation5], 0
    // Predicated region
    $region2: #{tpu_custom_call.1} parent=1 // pred_check
      _
    $region3: #{tpu_custom_call.1} parent=1 // pred_check_branch
      %12 = sbr.rel (0) target = $region5
    $region4: #{tpu_custom_call.1} parent=1 // pred_region
      _
    $region5: #{tpu_custom_call.1} parent=1 // pred_fallthru
      _
    // Predicated region
    $region6: #{tpu_custom_call.1} parent=1 // pred_check
      _
    $region7: #{tpu_custom_call.1} parent=1 // pred_check_branch
      %14 = sbr.rel (0) target = $region9
    $region8: #{tpu_custom_call.1} parent=1 // pred_region
      _
    $region9: #{tpu_custom_call.1} parent=1 // pred_fallthru
      _
    %v15 = vld [vmem:[%s0] sm:$0xff]
    %v16 = vld [vmem:[%s0 + $0x8] sm:$0xff]
    %v17 = vld [vmem:[%s0 + $0x10] sm:$0xff]
    %v18 = vld [vmem:[%s0 + $0x18] sm:$0xff]
    %v19 = vld [vmem:[%s0 + $0x20] sm:$0xff]
    %v20 = vld [vmem:[%s0 + $0x28] sm:$0xff]
    %v21 = vld [vmem:[%s0 + $0x30] sm:$0xff]
    %v22 = vld [vmem:[%s0 + $0x38] sm:$0xff]
    %v23 = vld [vmem:[%s1] sm:$0xff]
    %v24 = vld [vmem:[%s1 + $0x8] sm:$0xff]
    %v25 = vld [vmem:[%s1 + $0x10] sm:$0xff]
    %v26 = vld [vmem:[%s1 + $0x18] sm:$0xff]
    %v27 = vld [vmem:[%s1 + $0x20] sm:$0xff]
    %v28 = vld [vmem:[%s1 + $0x28] sm:$0xff]
    %v29 = vld [vmem:[%s1 + $0x30] sm:$0xff]
    %v30 = vld [vmem:[%s1 + $0x38] sm:$0xff]
    %vm31 = vcmask 261120
    %v33 = vsel %vm31, %v23, 0
    %v36 = vsel %vm31, %v24, 0
    %v39 = vsel %vm31, %v25, 0
    %v42 = vsel %vm31, %v26, 0
    %v45 = vsel %vm31, %v27, 0
    %v48 = vsel %vm31, %v28, 0
    %v51 = vsel %vm31, %v29, 0
    %v54 = vsel %vm31, %v30, 0
    %v57 = vsel %vm31, %v15, 0
    %v60 = vsel %vm31, %v16, 0
    %v63 = vsel %vm31, %v17, 0
    %v66 = vsel %vm31, %v18, 0
    %v69 = vsel %vm31, %v19, 0
    %v72 = vsel %vm31, %v20, 0
    %v75 = vsel %vm31, %v21, 0
    %v78 = vsel %vm31, %v22, 0
    %80 = vmatprep.subr.mxu0 0.0
    %81 = vmatpush1.xpose.msra.mxu0 %v57
    %82 = vmatprep.subr.mxu0 0.0
    %83 = vmatpush1.xpose.msra.mxu0 %v60
    %84 = vmatprep.subr.mxu0 0.0
    %85 = vmatpush1.xpose.msra.mxu0 %v63
    %86 = vmatprep.subr.mxu0 0.0
    %87 = vmatpush1.xpose.msra.mxu0 %v66
    %88 = vmatprep.subr.mxu0 0.0
    %89 = vmatpush1.xpose.msra.mxu0 %v69
    %90 = vmatprep.subr.mxu0 0.0
    %91 = vmatpush1.xpose.msra.mxu0 %v72
    %92 = vmatprep.subr.mxu0 0.0
    %93 = vmatpush1.xpose.msra.mxu0 %v75
    %94 = vmatprep.subr.mxu0 0.0
    %95 = vmatpush1.xpose.msra.mxu0 %v78
    %96 = vmatprep.subr.mxu0 0.0
    %97 = vmatpush1.xpose.msra.mxu0 0.0
    %98 = vmatprep.subr.mxu0 0.0
    %99 = vmatpush1.xpose.msra.mxu0 0.0
    %100 = vmatprep.subr.mxu0 0.0
    %101 = vmatpush1.xpose.msra.mxu0 0.0
    %102 = vmatprep.subr.mxu0 0.0
    %103 = vmatpush1.xpose.msra.mxu0 0.0
    %104 = vmatprep.subr.mxu0 0.0
    %105 = vmatpush1.xpose.msra.mxu0 0.0
    %106 = vmatprep.subr.mxu0 0.0
    %107 = vmatpush1.xpose.msra.mxu0 0.0
    %108 = vmatprep.subr.mxu0 0.0
    %109 = vmatpush1.xpose.msra.mxu0 0.0
    %110 = vmatprep.subr.mxu0 0.0
    %111 = vmatpush1.xpose.msra.mxu0 0.0
    %112 = vmatprep.subr.mxu0 0.0
    %113 = vmatpush1.xpose.msra.mxu0 0.0
    %114 = vmatprep.subr.mxu0 0.0
    %115 = vmatpush1.xpose.msra.mxu0 0.0
    %116 = vmatprep.subr.mxu0 0.0
    %117 = vmatpush1.xpose.msra.mxu0 0.0
    %118 = vmatprep.subr.mxu0 0.0
    %119 = vmatpush1.xpose.msra.mxu0 0.0
    %120 = vmatprep.subr.mxu0 0.0
    %121 = vmatpush1.xpose.msra.mxu0 0.0
    %122 = vmatprep.subr.mxu0 0.0
    %123 = vmatpush1.xpose.msra.mxu0 0.0
    %124 = vmatprep.subr.mxu0 0.0
    %125 = vmatpush1.xpose.msra.mxu0 0.0
    %126 = vmatprep.subr.mxu0 0.0
    %127 = vmatpush1.xpose.msra.mxu0 0.0
    %128 = vmatprep.subr.mxu0 0.0
    %129 = vmatpush1.xpose.msra.mxu0 0.0
    %130 = vmatprep.subr.mxu0 0.0
    %131 = vmatpush1.xpose.msra.mxu0 0.0
    %132 = vmatprep.subr.mxu0 0.0
    %133 = vmatpush1.xpose.msra.mxu0 0.0
    %134 = vmatprep.subr.mxu0 0.0
    %135 = vmatpush1.xpose.msra.mxu0 0.0
    %136 = vmatprep.subr.mxu0 0.0
    %137 = vmatpush1.xpose.msra.mxu0 0.0
    %138 = vmatprep.subr.mxu0 0.0
    %139 = vmatpush1.xpose.msra.mxu0 0.0
    %140 = vmatprep.subr.mxu0 0.0
    %141 = vmatpush1.xpose.msra.mxu0 0.0
    %142 = vmatprep.subr.mxu0 0.0
    %143 = vmatpush1.xpose.msra.mxu0 0.0
    %144 = vmatprep.mubr.f32.mxu0 0.0
    %145 = vmatmul.mubr.f32.gmra.mrb[0].mxu0 %v33
    %v146 = vpop.f32.mrb[0].mxu0
    %v147 = vadd.f32 0.0, %v146
    %v148 = vpop.f32.mrb[0].mxu0
    %149 = vmatprep.mubr.f32.mxu0 0.0
    %150 = vmatmul.mubr.f32.gmra.mrb[0].mxu0 %v36
    %v151 = vpop.f32.mrb[0].mxu0
    %v152 = vadd.f32 0.0, %v151
    %v153 = vpop.f32.mrb[0].mxu0
    %154 = vmatprep.mubr.f32.mxu0 0.0
    %155 = vmatmul.mubr.f32.gmra.mrb[0].mxu0 %v39
    %v156 = vpop.f32.mrb[0].mxu0
    %v157 = vadd.f32 0.0, %v156
    %v158 = vpop.f32.mrb[0].mxu0
    %159 = vmatprep.mubr.f32.mxu0 0.0
    %160 = vmatmul.mubr.f32.gmra.mrb[0].mxu0 %v42
    %v161 = vpop.f32.mrb[0].mxu0
    %v162 = vadd.f32 0.0, %v161
    %v163 = vpop.f32.mrb[0].mxu0
    %164 = vmatprep.mubr.f32.mxu0 0.0
    %165 = vmatmul.mubr.f32.gmra.mrb[0].mxu0 %v45
    %v166 = vpop.f32.mrb[0].mxu0
    %v167 = vadd.f32 0.0, %v166
    %v168 = vpop.f32.mrb[0].mxu0
    %169 = vmatprep.mubr.f32.mxu0 0.0
    %170 = vmatmul.mubr.f32.gmra.mrb[0].mxu0 %v48
    %v171 = vpop.f32.mrb[0].mxu0
    %v172 = vadd.f32 0.0, %v171
    %v173 = vpop.f32.mrb[0].mxu0
    %174 = vmatprep.mubr.f32.mxu0 0.0
    %175 = vmatmul.mubr.f32.gmra.mrb[0].mxu0 %v51
    %v176 = vpop.f32.mrb[0].mxu0
    %v177 = vadd.f32 0.0, %v176
    %v178 = vpop.f32.mrb[0].mxu0
    %179 = vmatprep.mubr.f32.mxu0 0.0
    %180 = vmatmul.mubr.f32.gmra.mrb[0].mxu0 %v54
    %v181 = vpop.f32.mrb[0].mxu0
    %v182 = vadd.f32 0.0, %v181
    %v183 = vpop.f32.mrb[0].mxu0
    %184 = vdwg.mxu0
    %vm193 = vcmp.lt.s32.totalorder %v147, 0
    %vm194 = vcmp.lt.s32.totalorder %v152, 0
    %vm195 = vcmp.lt.s32.totalorder %v157, 0
    %vm196 = vcmp.lt.s32.totalorder %v162, 0
    %vm197 = vcmp.lt.s32.totalorder %v167, 0
    %vm198 = vcmp.lt.s32.totalorder %v172, 0
    %vm199 = vcmp.lt.s32.totalorder %v177, 0
    %vm200 = vcmp.lt.s32.totalorder %v182, 0
    %v201 = vxor.u32 %v147, 2147483647
    %v202 = vxor.u32 %v152, 2147483647
    %v203 = vxor.u32 %v157, 2147483647
    %v204 = vxor.u32 %v162, 2147483647
    %v205 = vxor.u32 %v167, 2147483647
    %v206 = vxor.u32 %v172, 2147483647
    %v207 = vxor.u32 %v177, 2147483647
    %v208 = vxor.u32 %v182, 2147483647
    %v209 = vsel %vm193, %v201, %v147
    %v210 = vsel %vm194, %v202, %v152
    %v211 = vsel %vm195, %v203, %v157
    %v212 = vsel %vm196, %v204, %v162
    %v213 = vsel %vm197, %v205, %v167
    %v214 = vsel %vm198, %v206, %v172
    %v215 = vsel %vm199, %v207, %v177
    %v216 = vsel %vm200, %v208, %v182
    %v217 = vlaneseq
    %v218 = vshrl.u32 %v217, 7
    %v219 = vadd.s32 %v218, 8
    %v220 = vadd.s32 %v218, 16
    %v221 = vadd.s32 %v218, 24
    %v222 = vadd.s32 %v218, 32
    %v223 = vadd.s32 %v218, 40
    %v224 = vadd.s32 %v218, 48
    %v225 = vadd.s32 %v218, 56
    %v226 = vsub.s32 63, %v218
    %v227 = vsub.s32 63, %v219
    %v228 = vsub.s32 63, %v220
    %v229 = vsub.s32 63, %v221
    %v230 = vsub.s32 63, %v222
    %v231 = vsub.s32 63, %v223
    %v232 = vsub.s32 63, %v224
    %v233 = vsub.s32 63, %v225
    %v234 = vand.u32 %v209, 4294967232
    %v235 = vand.u32 %v210, 4294967232
    %v236 = vand.u32 %v211, 4294967232
    %v237 = vand.u32 %v212, 4294967232
    %v238 = vand.u32 %v213, 4294967232
    %v239 = vand.u32 %v214, 4294967232
    %v240 = vand.u32 %v215, 4294967232
    %v241 = vand.u32 %v216, 4294967232
    %v242 = vor.u32 %v234, %v226
    %v243 = vor.u32 %v235, %v227
    %v244 = vor.u32 %v236, %v228
    %v245 = vor.u32 %v237, %v229
    %v246 = vor.u32 %v238, %v230
    %v247 = vor.u32 %v239, %v231
    %v248 = vor.u32 %v240, %v232
    %v249 = vor.u32 %v241, %v233
    %vm250 = vcmask 523264
    %v251 = vsel %vm250, %v242, 2147483648
    %v252 = vsel %vm250, %v243, 2147483648
    %v253 = vsel %vm250, %v244, 2147483648
    %v254 = vsel %vm250, %v245, 2147483648
    %v255 = vsel %vm250, %v246, 2147483648
    %vm256 = vcmp.gt.s32.totalorder %v251, %v255
    %v257 = vsel %vm256, %v251, %v255
    %v258 = vsel %vm250, %v247, 2147483648
    %vm259 = vcmp.gt.s32.totalorder %v252, %v258
    %v260 = vsel %vm259, %v252, %v258
    %v261 = vsel %vm250, %v248, 2147483648
    %vm262 = vcmp.gt.s32.totalorder %v253, %v261
    %v263 = vsel %vm262, %v253, %v261
    %v264 = vsel %vm250, %v249, 2147483648
    %vm265 = vcmp.gt.s32.totalorder %v254, %v264
    %v266 = vsel %vm265, %v254, %v264
    %vm267 = vcmp.gt.s32.totalorder %v257, %v260
    %v268 = vsel %vm267, %v257, %v260
    %vm269 = vcmp.gt.s32.totalorder %v263, %v266
    %v270 = vsel %vm269, %v263, %v266
    %vm271 = vcmp.gt.s32.totalorder %v268, %v270
    %v272 = vsel %vm271, %v268, %v270
    %v273 = vrot.slane %v272, 4
    %vm274 = vcmp.gt.s32.totalorder %v272, %v273
    %v275 = vsel %vm274, %v272, %v273
    %v276 = vrot.slane %v275, 2
    %vm277 = vcmp.gt.s32.totalorder %v275, %v276
    %v278 = vsel %vm277, %v275, %v276
    %v279 = vrot.slane %v278, 1
    %vm280 = vcmp.gt.s32.totalorder %v278, %v279
    %v281 = vsel %vm280, %v278, %v279
    %vm282 = vcmp.eq.s32.totalorder %v242, %v281
    %vm283 = vcmp.eq.s32.totalorder %v243, %v281
    %vm284 = vcmp.eq.s32.totalorder %v244, %v281
    %vm285 = vcmp.eq.s32.totalorder %v245, %v281
    %vm286 = vcmp.eq.s32.totalorder %v246, %v281
    %vm287 = vcmp.eq.s32.totalorder %v247, %v281
    %vm288 = vcmp.eq.s32.totalorder %v248, %v281
    %vm289 = vcmp.eq.s32.totalorder %v249, %v281
    %v290 = vsel %vm282, 2147483648, %v242
    %v291 = vsel %vm283, 2147483648, %v243
    %v292 = vsel %vm284, 2147483648, %v244
    %v293 = vsel %vm285, 2147483648, %v245
    %v294 = vsel %vm286, 2147483648, %v246
    %v295 = vsel %vm287, 2147483648, %v247
    %v296 = vsel %vm288, 2147483648, %v248
    %v297 = vsel %vm289, 2147483648, %v249
    %v298 = vsel %vm250, %v290, 2147483648
    %v299 = vsel %vm250, %v291, 2147483648
    %v300 = vsel %vm250, %v292, 2147483648
    %v301 = vsel %vm250, %v293, 2147483648
    %v302 = vsel %vm250, %v294, 2147483648
    %vm303 = vcmp.gt.s32.totalorder %v298, %v302
    %v304 = vsel %vm303, %v298, %v302
    %v305 = vsel %vm250, %v295, 2147483648
    %vm306 = vcmp.gt.s32.totalorder %v299, %v305
    %v307 = vsel %vm306, %v299, %v305
    %v308 = vsel %vm250, %v296, 2147483648
    %vm309 = vcmp.gt.s32.totalorder %v300, %v308
    %v310 = vsel %vm309, %v300, %v308
    %v311 = vsel %vm250, %v297, 2147483648
    %vm312 = vcmp.gt.s32.totalorder %v301, %v311
    %v313 = vsel %vm312, %v301, %v311
    %vm314 = vcmp.gt.s32.totalorder %v304, %v307
    %v315 = vsel %vm314, %v304, %v307
    %vm316 = vcmp.gt.s32.totalorder %v310, %v313
    %v317 = vsel %vm316, %v310, %v313
    %vm318 = vcmp.gt.s32.totalorder %v315, %v317
    %v319 = vsel %vm318, %v315, %v317
    %v320 = vrot.slane %v319, 4
    %vm321 = vcmp.gt.s32.totalorder %v319, %v320
    %v322 = vsel %vm321, %v319, %v320
    %v323 = vrot.slane %v322, 2
    %vm324 = vcmp.gt.s32.totalorder %v322, %v323
    %v325 = vsel %vm324, %v322, %v323
    %v326 = vrot.slane %v325, 1
    %vm327 = vcmp.gt.s32.totalorder %v325, %v326
    %v328 = vsel %vm327, %v325, %v326
    %vm329 = vcmp.eq.s32.totalorder %v290, %v328
    %vm330 = vcmp.eq.s32.totalorder %v291, %v328
    %vm331 = vcmp.eq.s32.totalorder %v292, %v328
    %vm332 = vcmp.eq.s32.totalorder %v293, %v328
    %vm333 = vcmp.eq.s32.totalorder %v294, %v328
    %vm334 = vcmp.eq.s32.totalorder %v295, %v328
    %vm335 = vcmp.eq.s32.totalorder %v296, %v328
    %vm336 = vcmp.eq.s32.totalorder %v297, %v328
    %v337 = vsel %vm329, 2147483648, %v290
    %v338 = vsel %vm330, 2147483648, %v291
    %v339 = vsel %vm331, 2147483648, %v292
    %v340 = vsel %vm332, 2147483648, %v293
    %v341 = vsel %vm333, 2147483648, %v294
    %v342 = vsel %vm334, 2147483648, %v295
    %v343 = vsel %vm335, 2147483648, %v296
    %v344 = vsel %vm336, 2147483648, %v297
    %v345 = vsel %vm250, %v337, 2147483648
    %v346 = vsel %vm250, %v338, 2147483648
    %v347 = vsel %vm250, %v339, 2147483648
    %v348 = vsel %vm250, %v340, 2147483648
    %v349 = vsel %vm250, %v341, 2147483648
    %vm350 = vcmp.gt.s32.totalorder %v345, %v349
    %v351 = vsel %vm350, %v345, %v349
    %v352 = vsel %vm250, %v342, 2147483648
    %vm353 = vcmp.gt.s32.totalorder %v346, %v352
    %v354 = vsel %vm353, %v346, %v352
    %v355 = vsel %vm250, %v343, 2147483648
    %vm356 = vcmp.gt.s32.totalorder %v347, %v355
    %v357 = vsel %vm356, %v347, %v355
    %v358 = vsel %vm250, %v344, 2147483648
    %vm359 = vcmp.gt.s32.totalorder %v348, %v358
    %v360 = vsel %vm359, %v348, %v358
    %vm361 = vcmp.gt.s32.totalorder %v351, %v354
    %v362 = vsel %vm361, %v351, %v354
    %vm363 = vcmp.gt.s32.totalorder %v357, %v360
    %v364 = vsel %vm363, %v357, %v360
    %vm365 = vcmp.gt.s32.totalorder %v362, %v364
    %v366 = vsel %vm365, %v362, %v364
    %v367 = vrot.slane %v366, 4
    %vm368 = vcmp.gt.s32.totalorder %v366, %v367
    %v369 = vsel %vm368, %v366, %v367
    %v370 = vrot.slane %v369, 2
    %vm371 = vcmp.gt.s32.totalorder %v369, %v370
    %v372 = vsel %vm371, %v369, %v370
    %v373 = vrot.slane %v372, 1
    %vm374 = vcmp.gt.s32.totalorder %v372, %v373
    %v375 = vsel %vm374, %v372, %v373
    %vm376 = vcmp.eq.s32.totalorder %v337, %v375
    %vm377 = vcmp.eq.s32.totalorder %v338, %v375
    %vm378 = vcmp.eq.s32.totalorder %v339, %v375
    %vm379 = vcmp.eq.s32.totalorder %v340, %v375
    %vm380 = vcmp.eq.s32.totalorder %v341, %v375
    %vm381 = vcmp.eq.s32.totalorder %v342, %v375
    %vm382 = vcmp.eq.s32.totalorder %v343, %v375
    %vm383 = vcmp.eq.s32.totalorder %v344, %v375
    %v384 = vsel %vm376, 2147483648, %v337
    %v385 = vsel %vm377, 2147483648, %v338
    %v386 = vsel %vm378, 2147483648, %v339
    %v387 = vsel %vm379, 2147483648, %v340
    %v388 = vsel %vm380, 2147483648, %v341
    %v389 = vsel %vm381, 2147483648, %v342
    %v390 = vsel %vm382, 2147483648, %v343
    %v391 = vsel %vm383, 2147483648, %v344
    %v392 = vsel %vm250, %v384, 2147483648
    %v393 = vsel %vm250, %v385, 2147483648
    %v394 = vsel %vm250, %v386, 2147483648
    %v395 = vsel %vm250, %v387, 2147483648
    %v396 = vsel %vm250, %v388, 2147483648
    %vm397 = vcmp.gt.s32.totalorder %v392, %v396
    %v398 = vsel %vm397, %v392, %v396
    %v399 = vsel %vm250, %v389, 2147483648
    %vm400 = vcmp.gt.s32.totalorder %v393, %v399
    %v401 = vsel %vm400, %v393, %v399
    %v402 = vsel %vm250, %v390, 2147483648
    %vm403 = vcmp.gt.s32.totalorder %v394, %v402
    %v404 = vsel %vm403, %v394, %v402
    %v405 = vsel %vm250, %v391, 2147483648
    %vm406 = vcmp.gt.s32.totalorder %v395, %v405
    %v407 = vsel %vm406, %v395, %v405
    %vm408 = vcmp.gt.s32.totalorder %v398, %v401
    %v409 = vsel %vm408, %v398, %v401
    %vm410 = vcmp.gt.s32.totalorder %v404, %v407
    %v411 = vsel %vm410, %v404, %v407
    %vm412 = vcmp.gt.s32.totalorder %v409, %v411
    %v413 = vsel %vm412, %v409, %v411
    %v414 = vrot.slane %v413, 4
    %vm415 = vcmp.gt.s32.totalorder %v413, %v414
    %v416 = vsel %vm415, %v413, %v414
    %v417 = vrot.slane %v416, 2
    %vm418 = vcmp.gt.s32.totalorder %v416, %v417
    %v419 = vsel %vm418, %v416, %v417
    %v420 = vrot.slane %v419, 1
    %vm421 = vcmp.gt.s32.totalorder %v419, %v420
    %v422 = vsel %vm421, %v419, %v420
    %v423 = vand.u32 %v281, 63
    %v424 = vsub.s32 63, %v423
    %v425 = vand.u32 %v281, 4294967232
    %vm426 = vcmp.lt.s32.totalorder %v425, 0
    %v427 = vxor.u32 %v425, 2147483647
    %v428 = vsel %vm426, %v427, %v425
    %v430 = vmul.f32 %v428, 0.17677669
    %v431 = vand.u32 %v328, 63
    %v432 = vsub.s32 63, %v431
    %v433 = vand.u32 %v328, 4294967232
    %vm434 = vcmp.lt.s32.totalorder %v433, 0
    %v435 = vxor.u32 %v433, 2147483647
    %v436 = vsel %vm434, %v435, %v433
    %v438 = vmul.f32 %v436, 0.17677669
    %v439 = vand.u32 %v375, 63
    %v440 = vsub.s32 63, %v439
    %v441 = vand.u32 %v375, 4294967232
    %vm442 = vcmp.lt.s32.totalorder %v441, 0
    %v443 = vxor.u32 %v441, 2147483647
    %v444 = vsel %vm442, %v443, %v441
    %v446 = vmul.f32 %v444, 0.17677669
    %v447 = vand.u32 %v422, 63
    %v448 = vsub.s32 63, %v447
    %v449 = vand.u32 %v422, 4294967232
    %vm450 = vcmp.lt.s32.totalorder %v449, 0
    %v451 = vxor.u32 %v449, 2147483647
    %v452 = vsel %vm450, %v451, %v449
    %v454 = vmul.f32 %v452, 0.17677669
    %v455 = vsub.f32 %v438, %v430
    %v456 = vmul.f32 %v455, 1.442695
    %v457 = vpow.pop %v456
    %v458 = vsub.f32 %v446, %v430
    %v459 = vmul.f32 %v458, 1.442695
    %v460 = vpow.pop %v459
    %v461 = vsub.f32 %v454, %v430
    %v462 = vmul.f32 %v461, 1.442695
    %v463 = vpow.pop %v462
    %v464 = vadd.f32 %v457, %v460
    %v465 = vadd.f32 %v464, %v463
    %v466 = vadd.f32 %v465, 1.0
    %v467 = vrcp.pop %v466
    %v468 = vmul.f32 %v466, %v467
    %v469 = vsub.f32 2.0, %v468
    %v470 = vmul.f32 %v467, %v469
    %v471 = vmul.f32 %v457, %v470
    %v472 = vmul.f32 %v460, %v470
    %v473 = vmul.f32 %v463, %v470
    %475 = vrot.lane.b32.xlu0 %v471, 64
    %v476 = vpop.permute.xlu0 %475
    %479 = vrot.lane.b32.xlu0 %v473, 64
    %v480 = vpop.permute.xlu0 %479
    %v482 = vsel %vm250, %v470, %v476
    %v483 = vsel %vm250, %v472, %v480
    %v486 = vcombine.low %v482, %v483
    %v488 = vunpack.c.l.s4 1966171168
    %v489 = vunpack.c.0.s8 %v488
    %v490 = vlaneseq
    %v491 = vshrl.u32 %v490, 7
    %v492 = vsub.s32 %v489, %v491
    %v493 = vrot.slane %v486, %v492
    %v495 = vunpack.c.l.s4 1966171168
    %v496 = vunpack.c.0.s8 %v495
    %v497 = vlaneseq
    %v498 = vshrl.u32 %v497, 7
    %v499 = vsub.s32 %v496, %v498
    %v500 = vrot.slane %v493, %v499
    %v502 = vlaneseq
    %vm503 = vcmp.ge.s32.totalorder %v502, 0
    %vm504 = vcmp.lt.s32.totalorder %v502, 256
    %vm505 = vmand %vm503, %vm504
    %506 = vst.msk [vmem:[#allocation2] ss:$2 sm:$0x3] %vm505, %v500
    %507 = vrot.lane.b32.xlu0 %v432, 64
    %v508 = vpop.permute.xlu0 %507
    %509 = vrot.lane.b32.xlu0 %v448, 64
    %v510 = vpop.permute.xlu0 %509
    %v511 = vsel %vm250, %v424, %v508
    %v512 = vsel %vm250, %v440, %v510
    %v513 = vcombine.low %v511, %v512
    %v515 = vunpack.c.l.s4 1966171168
    %v516 = vunpack.c.0.s8 %v515
    %v517 = vlaneseq
    %v518 = vshrl.u32 %v517, 7
    %v519 = vsub.s32 %v516, %v518
    %v520 = vrot.slane %v513, %v519
    %v522 = vunpack.c.l.s4 1966171168
    %v523 = vunpack.c.0.s8 %v522
    %v524 = vlaneseq
    %v525 = vshrl.u32 %v524, 7
    %v526 = vsub.s32 %v523, %v525
    %v527 = vrot.slane %v520, %v526
    %528 = vst.msk [vmem:[#allocation4] ss:$2 sm:$0x3] %vm505, %v527
    %s529 = scalar_lea.vmem %s0, 64
    %v530 = vld [vmem:[%s529] sm:$0xff]
    %v531 = vld [vmem:[%s529 + $0x8] sm:$0xff]
    %v532 = vld [vmem:[%s529 + $0x10] sm:$0xff]
    %v533 = vld [vmem:[%s529 + $0x18] sm:$0xff]
    %v534 = vld [vmem:[%s529 + $0x20] sm:$0xff]
    %v535 = vld [vmem:[%s529 + $0x28] sm:$0xff]
    %v536 = vld [vmem:[%s529 + $0x30] sm:$0xff]
    %v537 = vld [vmem:[%s529 + $0x38] sm:$0xff]
    %s538 = scalar_lea.vmem %s1, 64
    %v539 = vld [vmem:[%s538] sm:$0xff]
    %v540 = vld [vmem:[%s538 + $0x8] sm:$0xff]
    %v541 = vld [vmem:[%s538 + $0x10] sm:$0xff]
    %v542 = vld [vmem:[%s538 + $0x18] sm:$0xff]
    %v543 = vld [vmem:[%s538 + $0x20] sm:$0xff]
    %v544 = vld [vmem:[%s538 + $0x28] sm:$0xff]
    %v545 = vld [vmem:[%s538 + $0x30] sm:$0xff]
    %v546 = vld [vmem:[%s538 + $0x38] sm:$0xff]
    %v548 = vsel %vm31, %v539, 0
    %v551 = vsel %vm31, %v540, 0
    %v554 = vsel %vm31, %v541, 0
    %v557 = vsel %vm31, %v542, 0
    %v560 = vsel %vm31, %v543, 0
    %v563 = vsel %vm31, %v544, 0
    %v566 = vsel %vm31, %v545, 0
    %v569 = vsel %vm31, %v546, 0
    %v572 = vsel %vm31, %v530, 0
    %v575 = vsel %vm31, %v531, 0
    %v578 = vsel %vm31, %v532, 0
    %v581 = vsel %vm31, %v533, 0
    %v584 = vsel %vm31, %v534, 0
    %v587 = vsel %vm31, %v535, 0
    %v590 = vsel %vm31, %v536, 0
    %v593 = vsel %vm31, %v537, 0
    %595 = vmatprep.subr.mxu0 0.0
    %596 = vmatpush1.xpose.msra.mxu0 %v572
    %597 = vmatprep.subr.mxu0 0.0
    %598 = vmatpush1.xpose.msra.mxu0 %v575
    %599 = vmatprep.subr.mxu0 0.0
    %600 = vmatpush1.xpose.msra.mxu0 %v578
    %601 = vmatprep.subr.mxu0 0.0
    %602 = vmatpush1.xpose.msra.mxu0 %v581
    %603 = vmatprep.subr.mxu0 0.0
    %604 = vmatpush1.xpose.msra.mxu0 %v584
    %605 = vmatprep.subr.mxu0 0.0
    %606 = vmatpush1.xpose.msra.mxu0 %v587
    %607 = vmatprep.subr.mxu0 0.0
    %608 = vmatpush1.xpose.msra.mxu0 %v590
    %609 = vmatprep.subr.mxu0 0.0
    %610 = vmatpush1.xpose.msra.mxu0 %v593
    %611 = vmatprep.subr.mxu0 0.0
    %612 = vmatpush1.xpose.msra.mxu0 0.0
    %613 = vmatprep.subr.mxu0 0.0
    %614 = vmatpush1.xpose.msra.mxu0 0.0
    %615 = vmatprep.subr.mxu0 0.0
    %616 = vmatpush1.xpose.msra.mxu0 0.0
    %617 = vmatprep.subr.mxu0 0.0
    %618 = vmatpush1.xpose.msra.mxu0 0.0
    %619 = vmatprep.subr.mxu0 0.0
    %620 = vmatpush1.xpose.msra.mxu0 0.0
    %621 = vmatprep.subr.mxu0 0.0
    %622 = vmatpush1.xpose.msra.mxu0 0.0
    %623 = vmatprep.subr.mxu0 0.0
    %624 = vmatpush1.xpose.msra.mxu0 0.0
    %625 = vmatprep.subr.mxu0 0.0
    %626 = vmatpush1.xpose.msra.mxu0 0.0
    %627 = vmatprep.subr.mxu0 0.0
    %628 = vmatpush1.xpose.msra.mxu0 0.0
    %629 = vmatprep.subr.mxu0 0.0
    %630 = vmatpush1.xpose.msra.mxu0 0.0
    %631 = vmatprep.subr.mxu0 0.0
    %632 = vmatpush1.xpose.msra.mxu0 0.0
    %633 = vmatprep.subr.mxu0 0.0
    %634 = vmatpush1.xpose.msra.mxu0 0.0
    %635 = vmatprep.subr.mxu0 0.0
    %636 = vmatpush1.xpose.msra.mxu0 0.0
    %637 = vmatprep.subr.mxu0 0.0
    %638 = vmatpush1.xpose.msra.mxu0 0.0
    %639 = vmatprep.subr.mxu0 0.0
    %640 = vmatpush1.xpose.msra.mxu0 0.0
    %641 = vmatprep.subr.mxu0 0.0
    %642 = vmatpush1.xpose.msra.mxu0 0.0
    %643 = vmatprep.subr.mxu0 0.0
    %644 = vmatpush1.xpose.msra.mxu0 0.0
    %645 = vmatprep.subr.mxu0 0.0
    %646 = vmatpush1.xpose.msra.mxu0 0.0
    %647 = vmatprep.subr.mxu0 0.0
    %648 = vmatpush1.xpose.msra.mxu0 0.0
    %649 = vmatprep.subr.mxu0 0.0
    %650 = vmatpush1.xpose.msra.mxu0 0.0
    %651 = vmatprep.subr.mxu0 0.0
    %652 = vmatpush1.xpose.msra.mxu0 0.0
    %653 = vmatprep.subr.mxu0 0.0
    %654 = vmatpush1.xpose.msra.mxu0 0.0
    %655 = vmatprep.subr.mxu0 0.0
    %656 = vmatpush1.xpose.msra.mxu0 0.0
    %657 = vmatprep.subr.mxu0 0.0
    %658 = vmatpush1.xpose.msra.mxu0 0.0
    %659 = vmatprep.mubr.f32.mxu0 0.0
    %660 = vmatmul.mubr.f32.gmra.mrb[0].mxu0 %v548
    %v661 = vpop.f32.mrb[0].mxu0
    %v662 = vadd.f32 0.0, %v661
    %v663 = vpop.f32.mrb[0].mxu0
    %664 = vmatprep.mubr.f32.mxu0 0.0
    %665 = vmatmul.mubr.f32.gmra.mrb[0].mxu0 %v551
    %v666 = vpop.f32.mrb[0].mxu0
    %v667 = vadd.f32 0.0, %v666
    %v668 = vpop.f32.mrb[0].mxu0
    %669 = vmatprep.mubr.f32.mxu0 0.0
    %670 = vmatmul.mubr.f32.gmra.mrb[0].mxu0 %v554
    %v671 = vpop.f32.mrb[0].mxu0
    %v672 = vadd.f32 0.0, %v671
    %v673 = vpop.f32.mrb[0].mxu0
    %674 = vmatprep.mubr.f32.mxu0 0.0
    %675 = vmatmul.mubr.f32.gmra.mrb[0].mxu0 %v557
    %v676 = vpop.f32.mrb[0].mxu0
    %v677 = vadd.f32 0.0, %v676
    %v678 = vpop.f32.mrb[0].mxu0
    %679 = vmatprep.mubr.f32.mxu0 0.0
    %680 = vmatmul.mubr.f32.gmra.mrb[0].mxu0 %v560
    %v681 = vpop.f32.mrb[0].mxu0
    %v682 = vadd.f32 0.0, %v681
    %v683 = vpop.f32.mrb[0].mxu0
    %684 = vmatprep.mubr.f32.mxu0 0.0
    %685 = vmatmul.mubr.f32.gmra.mrb[0].mxu0 %v563
    %v686 = vpop.f32.mrb[0].mxu0
    %v687 = vadd.f32 0.0, %v686
    %v688 = vpop.f32.mrb[0].mxu0
    %689 = vmatprep.mubr.f32.mxu0 0.0
    %690 = vmatmul.mubr.f32.gmra.mrb[0].mxu0 %v566
    %v691 = vpop.f32.mrb[0].mxu0
    %v692 = vadd.f32 0.0, %v691
    %v693 = vpop.f32.mrb[0].mxu0
    %694 = vmatprep.mubr.f32.mxu0 0.0
    %695 = vmatmul.mubr.f32.gmra.mrb[0].mxu0 %v569
    %v696 = vpop.f32.mrb[0].mxu0
    %v697 = vadd.f32 0.0, %v696
    %v698 = vpop.f32.mrb[0].mxu0
    %699 = vdwg.mxu0
    %vm708 = vcmp.lt.s32.totalorder %v662, 0
    %vm709 = vcmp.lt.s32.totalorder %v667, 0
    %vm710 = vcmp.lt.s32.totalorder %v672, 0
    %vm711 = vcmp.lt.s32.totalorder %v677, 0
    %vm712 = vcmp.lt.s32.totalorder %v682, 0
    %vm713 = vcmp.lt.s32.totalorder %v687, 0
    %vm714 = vcmp.lt.s32.totalorder %v692, 0
    %vm715 = vcmp.lt.s32.totalorder %v697, 0
    %v716 = vxor.u32 %v662, 2147483647
    %v717 = vxor.u32 %v667, 2147483647
    %v718 = vxor.u32 %v672, 2147483647
    %v719 = vxor.u32 %v677, 2147483647
    %v720 = vxor.u32 %v682, 2147483647
    %v721 = vxor.u32 %v687, 2147483647
    %v722 = vxor.u32 %v692, 2147483647
    %v723 = vxor.u32 %v697, 2147483647
    %v724 = vsel %vm708, %v716, %v662
    %v725 = vsel %vm709, %v717, %v667
    %v726 = vsel %vm710, %v718, %v672
    %v727 = vsel %vm711, %v719, %v677
    %v728 = vsel %vm712, %v720, %v682
    %v729 = vsel %vm713, %v721, %v687
    %v730 = vsel %vm714, %v722, %v692
    %v731 = vsel %vm715, %v723, %v697
    %v732 = vand.u32 %v724, 4294967232
    %v733 = vand.u32 %v725, 4294967232
    %v734 = vand.u32 %v726, 4294967232
    %v735 = vand.u32 %v727, 4294967232
    %v736 = vand.u32 %v728, 4294967232
    %v737 = vand.u32 %v729, 4294967232
    %v738 = vand.u32 %v730, 4294967232
    %v739 = vand.u32 %v731, 4294967232
    %v740 = vor.u32 %v732, %v226
    %v741 = vor.u32 %v733, %v227
    %v742 = vor.u32 %v734, %v228
    %v743 = vor.u32 %v735, %v229
    %v744 = vor.u32 %v736, %v230
    %v745 = vor.u32 %v737, %v231
    %v746 = vor.u32 %v738, %v232
    %v747 = vor.u32 %v739, %v233
    %v748 = vsel %vm250, %v740, 2147483648
    %v749 = vsel %vm250, %v741, 2147483648
    %v750 = vsel %vm250, %v742, 2147483648
    %v751 = vsel %vm250, %v743, 2147483648
    %v752 = vsel %vm250, %v744, 2147483648
    %vm753 = vcmp.gt.s32.totalorder %v748, %v752
    %v754 = vsel %vm753, %v748, %v752
    %v755 = vsel %vm250, %v745, 2147483648
    %vm756 = vcmp.gt.s32.totalorder %v749, %v755
    %v757 = vsel %vm756, %v749, %v755
    %v758 = vsel %vm250, %v746, 2147483648
    %vm759 = vcmp.gt.s32.totalorder %v750, %v758
    %v760 = vsel %vm759, %v750, %v758
    %v761 = vsel %vm250, %v747, 2147483648
    %vm762 = vcmp.gt.s32.totalorder %v751, %v761
    %v763 = vsel %vm762, %v751, %v761
    %vm764 = vcmp.gt.s32.totalorder %v754, %v757
    %v765 = vsel %vm764, %v754, %v757
    %vm766 = vcmp.gt.s32.totalorder %v760, %v763
    %v767 = vsel %vm766, %v760, %v763
    %vm768 = vcmp.gt.s32.totalorder %v765, %v767
    %v769 = vsel %vm768, %v765, %v767
    %v770 = vrot.slane %v769, 4
    %vm771 = vcmp.gt.s32.totalorder %v769, %v770
    %v772 = vsel %vm771, %v769, %v770
    %v773 = vrot.slane %v772, 2
    %vm774 = vcmp.gt.s32.totalorder %v772, %v773
    %v775 = vsel %vm774, %v772, %v773
    %v776 = vrot.slane %v775, 1
    %vm777 = vcmp.gt.s32.totalorder %v775, %v776
    %v778 = vsel %vm777, %v775, %v776
    %vm779 = vcmp.eq.s32.totalorder %v740, %v778
    %vm780 = vcmp.eq.s32.totalorder %v741, %v778
    %vm781 = vcmp.eq.s32.totalorder %v742, %v778
    %vm782 = vcmp.eq.s32.totalorder %v743, %v778
    %vm783 = vcmp.eq.s32.totalorder %v744, %v778
    %vm784 = vcmp.eq.s32.totalorder %v745, %v778
    %vm785 = vcmp.eq.s32.totalorder %v746, %v778
    %vm786 = vcmp.eq.s32.totalorder %v747, %v778
    %v787 = vsel %vm779, 2147483648, %v740
    %v788 = vsel %vm780, 2147483648, %v741
    %v789 = vsel %vm781, 2147483648, %v742
    %v790 = vsel %vm782, 2147483648, %v743
    %v791 = vsel %vm783, 2147483648, %v744
    %v792 = vsel %vm784, 2147483648, %v745
    %v793 = vsel %vm785, 2147483648, %v746
    %v794 = vsel %vm786, 2147483648, %v747
    %v795 = vsel %vm250, %v787, 2147483648
    %v796 = vsel %vm250, %v788, 2147483648
    %v797 = vsel %vm250, %v789, 2147483648
    %v798 = vsel %vm250, %v790, 2147483648
    %v799 = vsel %vm250, %v791, 2147483648
    %vm800 = vcmp.gt.s32.totalorder %v795, %v799
    %v801 = vsel %vm800, %v795, %v799
    %v802 = vsel %vm250, %v792, 2147483648
    %vm803 = vcmp.gt.s32.totalorder %v796, %v802
    %v804 = vsel %vm803, %v796, %v802
    %v805 = vsel %vm250, %v793, 2147483648
    %vm806 = vcmp.gt.s32.totalorder %v797, %v805
    %v807 = vsel %vm806, %v797, %v805
    %v808 = vsel %vm250, %v794, 2147483648
    %vm809 = vcmp.gt.s32.totalorder %v798, %v808
    %v810 = vsel %vm809, %v798, %v808
    %vm811 = vcmp.gt.s32.totalorder %v801, %v804
    %v812 = vsel %vm811, %v801, %v804
    %vm813 = vcmp.gt.s32.totalorder %v807, %v810
    %v814 = vsel %vm813, %v807, %v810
    %vm815 = vcmp.gt.s32.totalorder %v812, %v814
    %v816 = vsel %vm815, %v812, %v814
    %v817 = vrot.slane %v816, 4
    %vm818 = vcmp.gt.s32.totalorder %v816, %v817
    %v819 = vsel %vm818, %v816, %v817
    %v820 = vrot.slane %v819, 2
    %vm821 = vcmp.gt.s32.totalorder %v819, %v820
    %v822 = vsel %vm821, %v819, %v820
    %v823 = vrot.slane %v822, 1
    %vm824 = vcmp.gt.s32.totalorder %v822, %v823
    %v825 = vsel %vm824, %v822, %v823
    %vm826 = vcmp.eq.s32.totalorder %v787, %v825
    %vm827 = vcmp.eq.s32.totalorder %v788, %v825
    %vm828 = vcmp.eq.s32.totalorder %v789, %v825
    %vm829 = vcmp.eq.s32.totalorder %v790, %v825
    %vm830 = vcmp.eq.s32.totalorder %v791, %v825
    %vm831 = vcmp.eq.s32.totalorder %v792, %v825
    %vm832 = vcmp.eq.s32.totalorder %v793, %v825
    %vm833 = vcmp.eq.s32.totalorder %v794, %v825
    %v834 = vsel %vm826, 2147483648, %v787
    %v835 = vsel %vm827, 2147483648, %v788
    %v836 = vsel %vm828, 2147483648, %v789
    %v837 = vsel %vm829, 2147483648, %v790
    %v838 = vsel %vm830, 2147483648, %v791
    %v839 = vsel %vm831, 2147483648, %v792
    %v840 = vsel %vm832, 2147483648, %v793
    %v841 = vsel %vm833, 2147483648, %v794
    %v842 = vsel %vm250, %v834, 2147483648
    %v843 = vsel %vm250, %v835, 2147483648
    %v844 = vsel %vm250, %v836, 2147483648
    %v845 = vsel %vm250, %v837, 2147483648
    %v846 = vsel %vm250, %v838, 2147483648
    %vm847 = vcmp.gt.s32.totalorder %v842, %v846
    %v848 = vsel %vm847, %v842, %v846
    %v849 = vsel %vm250, %v839, 2147483648
    %vm850 = vcmp.gt.s32.totalorder %v843, %v849
    %v851 = vsel %vm850, %v843, %v849
    %v852 = vsel %vm250, %v840, 2147483648
    %vm853 = vcmp.gt.s32.totalorder %v844, %v852
    %v854 = vsel %vm853, %v844, %v852
    %v855 = vsel %vm250, %v841, 2147483648
    %vm856 = vcmp.gt.s32.totalorder %v845, %v855
    %v857 = vsel %vm856, %v845, %v855
    %vm858 = vcmp.gt.s32.totalorder %v848, %v851
    %v859 = vsel %vm858, %v848, %v851
    %vm860 = vcmp.gt.s32.totalorder %v854, %v857
    %v861 = vsel %vm860, %v854, %v857
    %vm862 = vcmp.gt.s32.totalorder %v859, %v861
    %v863 = vsel %vm862, %v859, %v861
    %v864 = vrot.slane %v863, 4
    %vm865 = vcmp.gt.s32.totalorder %v863, %v864
    %v866 = vsel %vm865, %v863, %v864
    %v867 = vrot.slane %v866, 2
    %vm868 = vcmp.gt.s32.totalorder %v866, %v867
    %v869 = vsel %vm868, %v866, %v867
    %v870 = vrot.slane %v869, 1
    %vm871 = vcmp.gt.s32.totalorder %v869, %v870
    %v872 = vsel %vm871, %v869, %v870
    %vm873 = vcmp.eq.s32.totalorder %v834, %v872
    %vm874 = vcmp.eq.s32.totalorder %v835, %v872
    %vm875 = vcmp.eq.s32.totalorder %v836, %v872
    %vm876 = vcmp.eq.s32.totalorder %v837, %v872
    %vm877 = vcmp.eq.s32.totalorder %v838, %v872
    %vm878 = vcmp.eq.s32.totalorder %v839, %v872
    %vm879 = vcmp.eq.s32.totalorder %v840, %v872
    %vm880 = vcmp.eq.s32.totalorder %v841, %v872
    %v881 = vsel %vm873, 2147483648, %v834
    %v882 = vsel %vm874, 2147483648, %v835
    %v883 = vsel %vm875, 2147483648, %v836
    %v884 = vsel %vm876, 2147483648, %v837
    %v885 = vsel %vm877, 2147483648, %v838
    %v886 = vsel %vm878, 2147483648, %v839
    %v887 = vsel %vm879, 2147483648, %v840
    %v888 = vsel %vm880, 2147483648, %v841
    %v889 = vsel %vm250, %v881, 2147483648
    %v890 = vsel %vm250, %v882, 2147483648
    %v891 = vsel %vm250, %v883, 2147483648
    %v892 = vsel %vm250, %v884, 2147483648
    %v893 = vsel %vm250, %v885, 2147483648
    %vm894 = vcmp.gt.s32.totalorder %v889, %v893
    %v895 = vsel %vm894, %v889, %v893
    %v896 = vsel %vm250, %v886, 2147483648
    %vm897 = vcmp.gt.s32.totalorder %v890, %v896
    %v898 = vsel %vm897, %v890, %v896
    %v899 = vsel %vm250, %v887, 2147483648
    %vm900 = vcmp.gt.s32.totalorder %v891, %v899
    %v901 = vsel %vm900, %v891, %v899
    %v902 = vsel %vm250, %v888, 2147483648
    %vm903 = vcmp.gt.s32.totalorder %v892, %v902
    %v904 = vsel %vm903, %v892, %v902
    %vm905 = vcmp.gt.s32.totalorder %v895, %v898
    %v906 = vsel %vm905, %v895, %v898
    %vm907 = vcmp.gt.s32.totalorder %v901, %v904
    %v908 = vsel %vm907, %v901, %v904
    %vm909 = vcmp.gt.s32.totalorder %v906, %v908
    %v910 = vsel %vm909, %v906, %v908
    %v911 = vrot.slane %v910, 4
    %vm912 = vcmp.gt.s32.totalorder %v910, %v911
    %v913 = vsel %vm912, %v910, %v911
    %v914 = vrot.slane %v913, 2
    %vm915 = vcmp.gt.s32.totalorder %v913, %v914
    %v916 = vsel %vm915, %v913, %v914
    %v917 = vrot.slane %v916, 1
    %vm918 = vcmp.gt.s32.totalorder %v916, %v917
    %v919 = vsel %vm918, %v916, %v917
    %v920 = vand.u32 %v778, 63
    %v921 = vsub.s32 63, %v920
    %v922 = vand.u32 %v778, 4294967232
    %vm923 = vcmp.lt.s32.totalorder %v922, 0
    %v924 = vxor.u32 %v922, 2147483647
    %v925 = vsel %vm923, %v924, %v922
    %v927 = vmul.f32 %v925, 0.17677669
    %v928 = vand.u32 %v825, 63
    %v929 = vsub.s32 63, %v928
    %v930 = vand.u32 %v825, 4294967232
    %vm931 = vcmp.lt.s32.totalorder %v930, 0
    %v932 = vxor.u32 %v930, 2147483647
    %v933 = vsel %vm931, %v932, %v930
    %v935 = vmul.f32 %v933, 0.17677669
    %v936 = vand.u32 %v872, 63
    %v937 = vsub.s32 63, %v936
    %v938 = vand.u32 %v872, 4294967232
    %vm939 = vcmp.lt.s32.totalorder %v938, 0
    %v940 = vxor.u32 %v938, 2147483647
    %v941 = vsel %vm939, %v940, %v938
    %v943 = vmul.f32 %v941, 0.17677669
    %v944 = vand.u32 %v919, 63
    %v945 = vsub.s32 63, %v944
    %v946 = vand.u32 %v919, 4294967232
    %vm947 = vcmp.lt.s32.totalorder %v946, 0
    %v948 = vxor.u32 %v946, 2147483647
    %v949 = vsel %vm947, %v948, %v946
    %v951 = vmul.f32 %v949, 0.17677669
    %v952 = vsub.f32 %v935, %v927
    %v953 = vmul.f32 %v952, 1.442695
    %v954 = vpow.pop %v953
    %v955 = vsub.f32 %v943, %v927
    %v956 = vmul.f32 %v955, 1.442695
    %v957 = vpow.pop %v956
    %v958 = vsub.f32 %v951, %v927
    %v959 = vmul.f32 %v958, 1.442695
    %v960 = vpow.pop %v959
    %v961 = vadd.f32 %v954, %v957
    %v962 = vadd.f32 %v961, %v960
    %v963 = vadd.f32 %v962, 1.0
    %v964 = vrcp.pop %v963
    %v965 = vmul.f32 %v963, %v964
    %v966 = vsub.f32 2.0, %v965
    %v967 = vmul.f32 %v964, %v966
    %v968 = vmul.f32 %v954, %v967
    %v969 = vmul.f32 %v957, %v967
    %v970 = vmul.f32 %v960, %v967
    %972 = vrot.lane.b32.xlu0 %v968, 64
    %v973 = vpop.permute.xlu0 %972
    %976 = vrot.lane.b32.xlu0 %v970, 64
    %v977 = vpop.permute.xlu0 %976
    %v979 = vsel %vm250, %v967, %v973
    %v980 = vsel %vm250, %v969, %v977
    %v983 = vcombine.low %v979, %v980
    %v985 = vunpack.c.l.s4 1966171168
    %v986 = vunpack.c.0.s8 %v985
    %v987 = vlaneseq
    %v988 = vshrl.u32 %v987, 7
    %v989 = vsub.s32 %v986, %v988
    %v990 = vrot.slane %v983, %v989
    %v992 = vunpack.c.l.s4 1966171168
    %v993 = vunpack.c.0.s8 %v992
    %v994 = vlaneseq
    %v995 = vshrl.u32 %v994, 7
    %v996 = vsub.s32 %v993, %v995
    %v997 = vrot.slane %v990, %v996
    %s999 = scalar_lea.vmem [#allocation2], 1
    %1000 = vst.msk [vmem:[%s999] ss:$2 sm:$0x3] %vm505, %v997
    %1001 = vrot.lane.b32.xlu0 %v929, 64
    %v1002 = vpop.permute.xlu0 %1001
    %1003 = vrot.lane.b32.xlu0 %v945, 64
    %v1004 = vpop.permute.xlu0 %1003
    %v1005 = vsel %vm250, %v921, %v1002
    %v1006 = vsel %vm250, %v937, %v1004
    %v1007 = vcombine.low %v1005, %v1006
    %v1009 = vunpack.c.l.s4 1966171168
    %v1010 = vunpack.c.0.s8 %v1009
    %v1011 = vlaneseq
    %v1012 = vshrl.u32 %v1011, 7
    %v1013 = vsub.s32 %v1010, %v1012
    %v1014 = vrot.slane %v1007, %v1013
    %v1016 = vunpack.c.l.s4 1966171168
    %v1017 = vunpack.c.0.s8 %v1016
    %v1018 = vlaneseq
    %v1019 = vshrl.u32 %v1018, 7
    %v1020 = vsub.s32 %v1017, %v1019
    %v1021 = vrot.slane %v1014, %v1020
    %s1022 = scalar_lea.vmem [#allocation4], 1
    %1023 = vst.msk [vmem:[%s1022] ss:$2 sm:$0x3] %vm505, %v1021
    // Predicated region
    $region10: #{tpu_custom_call.1} parent=1 // pred_check
      _
    $region11: #{tpu_custom_call.1} parent=1 // pred_check_branch
      %1025 = sbr.rel (0) target = $region13
    $region12: #{tpu_custom_call.1} parent=1 // pred_region
      %s1027 = ssub.s32 64, 64
      %1028 = vsyncadd [#allocation3], %s1027
      %s1030 = sshll.u32 [#allocation2], 4
      %s1031 = int_to_ptr.vmem [resolvable:$true] %s1030
      %1033 = dma.vmem_to_hbm [thread:$0]  %s1031, 64, %s2, [#allocation3]
    $region13: #{tpu_custom_call.1} parent=1 // pred_fallthru
      _
    // Predicated region
    $region14: #{tpu_custom_call.1} parent=1 // pred_check
      _
    $region15: #{tpu_custom_call.1} parent=1 // pred_check_branch
      %1035 = sbr.rel (0) target = $region17
    $region16: #{tpu_custom_call.1} parent=1 // pred_region
      %s1037 = ssub.s32 64, 64
      %1038 = vsyncadd [#allocation5], %s1037
      %s1040 = sshll.u32 [#allocation4], 4
      %s1041 = int_to_ptr.vmem [resolvable:$true] %s1040
      %1043 = dma.vmem_to_hbm [thread:$0]  %s1041, 64, %s3, [#allocation5]
    $region17: #{tpu_custom_call.1} parent=1 // pred_fallthru
      _
    // Predicated region
    $region18: #{tpu_custom_call.1} parent=1 // pred_check
      _
    $region19: #{tpu_custom_call.1} parent=1 // pred_check_branch
      %1045 = sbr.rel (0) target = $region21
    $region20: #{tpu_custom_call.1} parent=1 // pred_region
      %1046 = dma.done [#allocation3], 64
    $region21: #{tpu_custom_call.1} parent=1 // pred_fallthru
      _
    // Predicated region
    $region22: #{tpu_custom_call.1} parent=1 // pred_check
      _
    $region23: #{tpu_custom_call.1} parent=1 // pred_check_branch
      %1048 = sbr.rel (0) target = $region25
    $region24: #{tpu_custom_call.1} parent=1 // pred_region
      %1049 = dma.done [#allocation5], 64
    $region25: #{tpu_custom_call.1} parent=1 // pred_fallthru
      _
    %1050 = vsyncpa [#allocation3], 1
    %1051 = vsyncpa [#allocation5], 1

</llo_original>
